<compile_context>
chip_gen: v7x
topology: tpu7x:2x2x1
jax: 0.10.0
libtpu: 0.0.40
codegen_flags: <defaults>
</compile_context>

<pallas_src>
import functools
import math

import jax
import jax.numpy as jnp
from jax import lax
from jax.experimental import pallas as pl
from jax.experimental.pallas import tpu as pltpu


# --------------------------------------------------------------------------
# Pass 1: accumulate G = x @ x^T and s = sum_n x over N tiles.
# --------------------------------------------------------------------------
def selfam_stats_kernel(x_ref, g_ref, s_ref):
    # x_ref: (1, C, TN) f32 input tile
    # g_ref: (1, C, C)  f32 accumulator (resident across the tile axis)
    # s_ref: (1, C, 1)  f32 accumulator (resident across the tile axis)
    t = pl.program_id(1)

    @pl.when(t == 0)
    def _():
        g_ref[...] = jnp.zeros_like(g_ref)
        s_ref[...] = jnp.zeros_like(s_ref)

    x = x_ref[0]                                   # [C, TN] f32
    xb = x.astype(jnp.bfloat16)
    # G += x @ x^T  (contract over the N tile, i.e. the lane axis)
    g_ref[0] += lax.dot_general(
        xb, xb, (((1,), (1,)), ((), ())), preferred_element_type=jnp.float32)
    # s += row-sum over the N tile (XLU lane reduction, free slot vs MXU)
    s_ref[0] += jnp.sum(x, axis=-1, keepdims=True)


# --------------------------------------------------------------------------
# Pass 2: out = M_b @ x + c_b + x, per N tile.
# --------------------------------------------------------------------------
def selfam_apply_kernel(x_ref, m_ref, c_ref, o_ref):
    # x_ref: (1, C, TN) f32, m_ref: (1, C, C) bf16, c_ref: (1, C, 1) f32
    x = x_ref[0]                                   # [C, TN] f32
    att = jnp.dot(m_ref[0], x.astype(jnp.bfloat16),
                  preferred_element_type=jnp.float32) + c_ref[0]
    o_ref[0] = (att + x).astype(o_ref.dtype)       # f32 residual add


# --------------------------------------------------------------------------
# Helpers: generation-aware VMEM budget and tile choice.
# --------------------------------------------------------------------------
def _vmem_budget_bytes():
    cap = None
    try:
        cap = getattr(pltpu.get_tpu_info(), "vmem_capacity_bytes", None)
    except Exception:
        cap = None
    if not cap:
        cap = 64 * 1024 * 1024        # conservative default (v7x physical VMEM)
    # leave ~25% headroom, never more than 100 MiB
    return int(min(cap * 3 // 4, 100 * 1024 * 1024))


def _pick_tile(n, max_tile):
    """Largest tile <= max_tile dividing n, preferring multiples of 128."""
    if n <= max_tile:
        return n
    t = (max_tile // 128) * 128
    while t >= 128:
        if n % t == 0:
            return t
        t -= 128
    # No lane-aligned divisor fits: fall back to the largest divisor that does
    # (correct, just masked stores).
    # TODO(synk): pad N up to a multiple of 128 for awkward spatial sizes.
    for t in range(max_tile, 0, -1):
        if n % t == 0:
            return t
    return 1


# --------------------------------------------------------------------------
# Wrapper.
# --------------------------------------------------------------------------
def selfam_pallas(x_nchw, wv, bv, wk, bk, wq, bq, wo, bo):
    """x_nchw: [B, C, H, W]; weights in PyTorch 1x1-conv layout:
    wv/wk/wq: [Ci, C], wo: [C, Ci]; biases 1-D.  Returns [B, C, H, W]."""
    B, C, H, W = x_nchw.shape
    N = H * W
    Ci = wv.shape[0]

    x = x_nchw.reshape(B, C, N)                     # channels on sublanes, N lane-dense

    vmem_bytes = _vmem_budget_bytes()
    # pass-2 per-step footprint ~ 2 (double buffer) * 4 B * C * tn for the x
    # tile plus the same for the output tile -> 16 * C * tn bytes (+ tiny M/c).
    max_tile = max(128, min(4096, ((vmem_bytes // (16 * C)) // 128) * 128))
    tn = _pick_tile(N, max_tile)
    nt = N // tn

    # ---- Pass 1: G_b, s_b ------------------------------------------------
    g, s = pl.pallas_call(
        selfam_stats_kernel,
        out_shape=(jax.ShapeDtypeStruct((B, C, C), jnp.float32),
                   jax.ShapeDtypeStruct((B, C, 1), jnp.float32)),
        grid=(B, nt),
        in_specs=[pl.BlockSpec((1, C, tn), lambda b, t: (b, 0, t))],
        out_specs=(pl.BlockSpec((1, C, C), lambda b, t: (b, 0, 0)),
                   pl.BlockSpec((1, C, 1), lambda b, t: (b, 0, 0))),
        compiler_params=pltpu.CompilerParams(
            dimension_semantics=("parallel", "arbitrary"),
            vmem_limit_bytes=vmem_bytes),
    )(x)

    # ---- Tiny per-batch compose (XLA): H -> sigmoid -> (M, c) -------------
    scale = 1.0 / math.sqrt(Ci * N)
    sflat = s[..., 0]                                               # [B, C]
    h = jnp.einsum('ic,bcd,jd->bij', wv, g, wk)                     # Wv G Wk^T
    wv_s = jnp.einsum('ic,bc->bi', wv, sflat)                       # [B, Ci]
    wk_s = jnp.einsum('jc,bc->bj', wk, sflat)                       # [B, Ci]
    h = (h
         + wv_s[:, :, None] * bk[None, None, :]
         + bv[None, :, None] * wk_s[:, None, :]
         + float(N) * (bv[:, None] * bk[None, :])[None])
    sh = jax.nn.sigmoid(h)                                          # [B, Ci, Ci]
    m = (scale * jnp.einsum('oa,bai,ic->boc', wo, sh, wq)).astype(jnp.bfloat16)
    c = (scale * jnp.einsum('oa,bai,i->bo', wo, sh, bq)
         + bo[None, :]).astype(jnp.float32)[:, :, None]             # [B, C, 1]

    # ---- Pass 2: out = M_b @ x + c_b + x ----------------------------------
    out = pl.pallas_call(
        selfam_apply_kernel,
        out_shape=jax.ShapeDtypeStruct((B, C, N), x.dtype),
        grid=(B, nt),
        in_specs=[
            pl.BlockSpec((1, C, tn), lambda b, t: (b, 0, t)),   # x tile
            pl.BlockSpec((1, C, C), lambda b, t: (b, 0, 0)),    # M_b
            pl.BlockSpec((1, C, 1), lambda b, t: (b, 0, 0)),    # c_b
        ],
        out_specs=pl.BlockSpec((1, C, tn), lambda b, t: (b, 0, t)),
        compiler_params=pltpu.CompilerParams(
            dimension_semantics=("parallel", "parallel"),
            vmem_limit_bytes=vmem_bytes),
    )(x, m, c)

    return out.reshape(B, C, H, W)


def selfam_ref(x, wv, bv, wk, bk, wq, bq, wo, bo):
    """Pure-JAX f32 reference following the PyTorch forward exactly (NCHW)."""
    B, C, H, W = x.shape
    Ci = wv.shape[0]
    xf = x.reshape(B, C, H * W)                                          # [B, C, N]
    V = jnp.einsum('oc,bcn->bon', wv, xf) + bv[None, :, None]
    K = jnp.einsum('oc,bcn->bon', wk, xf) + bk[None, :, None]
    Q = jnp.einsum('oc,bcn->bon', wq, xf) + bq[None, :, None]
    Hm = jnp.einsum('bin,bjn->bij', V, K)                                # V @ K^T
    Hm = jnp.einsum('bij,bjn->bin', jax.nn.sigmoid(Hm), Q) / math.sqrt(Ci * H * W)
    att = jnp.einsum('co,bon->bcn', wo, Hm) + bo[None, :, None]
    return (att + xf).reshape(B, C, H, W)


if __name__ == "__main__":
    # Shapes consistent with the module: in_channels=8, inter_channels=None -> 4
    B, C, H, W = 2, 8, 16, 16
    Ci = C // 2

    key = jax.random.PRNGKey(0)
    ks = jax.random.split(key, 9)
    x = jax.random.normal(ks[0], (B, C, H, W), jnp.float32)

    # deterministic synthetic parameters in PyTorch conv layout ([out, in] for 1x1)
    wv = 0.1 * jax.random.normal(ks[1], (Ci, C), jnp.float32)
    bv = 0.1 * jax.random.normal(ks[2], (Ci,), jnp.float32)
    wk = 0.1 * jax.random.normal(ks[3], (Ci, C), jnp.float32)
    bk = 0.1 * jax.random.normal(ks[4], (Ci,), jnp.float32)
    wq = 0.1 * jax.random.normal(ks[5], (Ci, C), jnp.float32)
    bq = 0.1 * jax.random.normal(ks[6], (Ci,), jnp.float32)
    wo = 0.1 * jax.random.normal(ks[7], (C, Ci), jnp.float32)
    bo = 0.1 * jax.random.normal(ks[8], (C,), jnp.float32)

    selfam = jax.jit(selfam_pallas)
    out = selfam(x, wv, bv, wk, bk, wq, bq, wo, bo)
    out = jax.block_until_ready(out)

    ref = selfam_ref(x, wv, bv, wk, bk, wq, bq, wo, bo)
    assert out.shape == (B, C, H, W)
    # bf16 MXU inputs with f32 accumulation -> tolerance set for bf16 precision.
    assert jnp.allclose(out, ref, atol=2e-2, rtol=2e-2), (
        f"max abs err {jnp.max(jnp.abs(out - ref))}")

    print("KERNEL_OK")
</pallas_src>

<mosaic_0001>
module attributes {stable_mosaic.version = 11 : i64} {
  func.func @selfam_stats_kernel(%arg0: i32, %arg1: i32, %arg2: memref<1x8x256xf32, #tpu.memory_space<vmem>>, %arg3: memref<1x8x8xf32, #tpu.memory_space<vmem>>, %arg4: memref<1x8x1xf32, #tpu.memory_space<vmem>>) attributes {dimension_semantics = [#tpu.dimension_semantics<parallel>, #tpu.dimension_semantics<arbitrary>], iteration_bounds = array<i64: 2, 1>, scalar_prefetch = 0 : i64, scratch_operands = 0 : i64, tpu.core_type = #tpu.core_type<tc>, window_params = [{transform_indices = @transform_0, window_bounds = array<i64: 1, 8, 256>}, {transform_indices = @transform_1, window_bounds = array<i64: 1, 8, 8>}, {transform_indices = @transform_2, window_bounds = array<i64: 1, 8, 1>}]} {
    %c0_i32 = arith.constant 0 : i32
    %0 = arith.cmpi eq, %arg1, %c0_i32 : i32
    %1 = arith.extui %0 : i1 to i32
    %c0_i32_0 = arith.constant 0 : i32
    %2 = arith.cmpi ne, %1, %c0_i32_0 : i32
    scf.if %2 {
      %cst_16 = arith.constant 0.000000e+00 : f32
      %21 = vector.broadcast %cst_16 : f32 to vector<1x8x8xf32>
      %c0_17 = arith.constant 0 : index
      %c0_18 = arith.constant 0 : index
      %c0_19 = arith.constant 0 : index
      %22 = vector.load %arg3[%c0_17, %c0_18, %c0_19] : memref<1x8x8xf32, #tpu.memory_space<vmem>>, vector<1x8x8xf32>
      tpu.vector_store %arg3[%c0_17, %c0_18, %c0_19], %21 {strides = array<i32>} : memref<1x8x8xf32, #tpu.memory_space<vmem>>, vector<1x8x8xf32>,
      %cst_20 = arith.constant 0.000000e+00 : f32
      %23 = vector.broadcast %cst_20 : f32 to vector<1x8x1xf32>
      %c0_21 = arith.constant 0 : index
      %c0_22 = arith.constant 0 : index
      %c0_23 = arith.constant 0 : index
      %24 = vector.load %arg4[%c0_21, %c0_22, %c0_23] : memref<1x8x1xf32, #tpu.memory_space<vmem>>, vector<1x8x1xf32>
      tpu.vector_store %arg4[%c0_21, %c0_22, %c0_23], %23 {strides = array<i32>} : memref<1x8x1xf32, #tpu.memory_space<vmem>>, vector<1x8x1xf32>,
    } else {
    }
    %c0 = arith.constant 0 : index
    %c0_1 = arith.constant 0 : index
    %c0_2 = arith.constant 0 : index
    %3 = vector.load %arg2[%c0, %c0_1, %c0_2] : memref<1x8x256xf32, #tpu.memory_space<vmem>>, vector<1x8x256xf32>
    %4 = vector.shape_cast %3 : vector<1x8x256xf32> to vector<8x256xf32>
    %5 = arith.truncf %4 : vector<8x256xf32> to vector<8x256xbf16>
    %c0_3 = arith.constant 0 : index
    %c0_4 = arith.constant 0 : index
    %c0_5 = arith.constant 0 : index
    %6 = vector.load %arg3[%c0_3, %c0_4, %c0_5] : memref<1x8x8xf32, #tpu.memory_space<vmem>>, vector<1x8x8xf32>
    %7 = vector.shape_cast %6 : vector<1x8x8xf32> to vector<8x8xf32>
    %cst = arith.constant dense<0.000000e+00> : vector<8x8xf32>
    %8 = tpu.matmul %5, %5, %cst {dimension_numbers = #tpu.dot_dimension_numbers<[1], [1], [0], [0], [0, 0, 1, 0], [], []>} : vector<8x256xbf16>, vector<8x256xbf16>, vector<8x8xf32> -> vector<8x8xf32>
    %9 = arith.addf %7, %8 : vector<8x8xf32>
    %c0_6 = arith.constant 0 : index
    %c0_7 = arith.constant 0 : index
    %c0_8 = arith.constant 0 : index
    %10 = vector.load %arg3[%c0_6, %c0_7, %c0_8] : memref<1x8x8xf32, #tpu.memory_space<vmem>>, vector<1x8x8xf32>
    %11 = vector.shape_cast %10 : vector<1x8x8xf32> to vector<8x8xf32>
    %12 = vector.shape_cast %9 : vector<8x8xf32> to vector<1x8x8xf32>
    tpu.vector_store %arg3[%c0_6, %c0_7, %c0_8], %12 {strides = array<i32>} : memref<1x8x8xf32, #tpu.memory_space<vmem>>, vector<1x8x8xf32>,
    %c0_9 = arith.constant 0 : index
    %c0_10 = arith.constant 0 : index
    %c0_11 = arith.constant 0 : index
    %13 = vector.load %arg4[%c0_9, %c0_10, %c0_11] : memref<1x8x1xf32, #tpu.memory_space<vmem>>, vector<1x8x1xf32>
    %14 = vector.shape_cast %13 : vector<1x8x1xf32> to vector<8x1xf32>
    %cst_12 = arith.constant dense<0.000000e+00> : vector<8xf32>
    %15 = vector.multi_reduction <add>, %4, %cst_12 [1] : vector<8x256xf32> to vector<8xf32>
    %16 = vector.shape_cast %15 : vector<8xf32> to vector<8x1xf32>
    %17 = arith.addf %14, %16 : vector<8x1xf32>
    %c0_13 = arith.constant 0 : index
    %c0_14 = arith.constant 0 : index
    %c0_15 = arith.constant 0 : index
    %18 = vector.load %arg4[%c0_13, %c0_14, %c0_15] : memref<1x8x1xf32, #tpu.memory_space<vmem>>, vector<1x8x1xf32>
    %19 = vector.shape_cast %18 : vector<1x8x1xf32> to vector<8x1xf32>
    %20 = vector.shape_cast %17 : vector<8x1xf32> to vector<1x8x1xf32>
    tpu.vector_store %arg4[%c0_13, %c0_14, %c0_15], %20 {strides = array<i32>} : memref<1x8x1xf32, #tpu.memory_space<vmem>>, vector<1x8x1xf32>,
    return
  }
  func.func @transform_0(%arg0: i32, %arg1: i32) -> (i32, i32, i32) {
    %c0_i32 = arith.constant 0 : i32
    %c0_i32_0 = arith.constant 0 : i32
    return %arg0, %c0_i32, %arg1 : i32, i32, i32
  }
  func.func @transform_1(%arg0: i32, %arg1: i32) -> (i32, i32, i32) {
    %c0_i32 = arith.constant 0 : i32
    %c0_i32_0 = arith.constant 0 : i32
    %c0_i32_1 = arith.constant 0 : i32
    return %arg0, %c0_i32, %c0_i32_0 : i32, i32, i32
  }
  func.func @transform_2(%arg0: i32, %arg1: i32) -> (i32, i32, i32) {
    %c0_i32 = arith.constant 0 : i32
    %c0_i32_0 = arith.constant 0 : i32
    %c0_i32_1 = arith.constant 0 : i32
    return %arg0, %c0_i32, %c0_i32_0 : i32, i32, i32
  }
}

module attributes {stable_mosaic.version = 11 : i64} {
  func.func @selfam_apply_kernel(%arg0: i32, %arg1: i32, %arg2: memref<1x8x256xf32, #tpu.memory_space<vmem>>, %arg3: memref<1x8x8xbf16, #tpu.memory_space<vmem>>, %arg4: memref<1x8x1xf32, #tpu.memory_space<vmem>>, %arg5: memref<1x8x256xf32, #tpu.memory_space<vmem>>) attributes {dimension_semantics = [#tpu.dimension_semantics<parallel>, #tpu.dimension_semantics<parallel>], iteration_bounds = array<i64: 2, 1>, scalar_prefetch = 0 : i64, scratch_operands = 0 : i64, tpu.core_type = #tpu.core_type<tc>, window_params = [{transform_indices = @transform_0, window_bounds = array<i64: 1, 8, 256>}, {transform_indices = @transform_1, window_bounds = array<i64: 1, 8, 8>}, {transform_indices = @transform_2, window_bounds = array<i64: 1, 8, 1>}, {transform_indices = @transform_3, window_bounds = array<i64: 1, 8, 256>}]} {
    %c0 = arith.constant 0 : index
    %c0_0 = arith.constant 0 : index
    %c0_1 = arith.constant 0 : index
    %0 = vector.load %arg2[%c0, %c0_0, %c0_1] : memref<1x8x256xf32, #tpu.memory_space<vmem>>, vector<1x8x256xf32>
    %1 = vector.shape_cast %0 : vector<1x8x256xf32> to vector<8x256xf32>
    %c0_2 = arith.constant 0 : index
    %c0_3 = arith.constant 0 : index
    %c0_4 = arith.constant 0 : index
    %2 = vector.load %arg3[%c0_2, %c0_3, %c0_4] : memref<1x8x8xbf16, #tpu.memory_space<vmem>>, vector<1x8x8xbf16>
    %3 = vector.shape_cast %2 : vector<1x8x8xbf16> to vector<8x8xbf16>
    %4 = arith.truncf %1 : vector<8x256xf32> to vector<8x256xbf16>
    %cst = arith.constant dense<0.000000e+00> : vector<8x256xf32>
    %5 = tpu.matmul %3, %4, %cst {dimension_numbers = #tpu.dot_dimension_numbers<[1], [0], [0], [1], [0, 0, 1, 1], [], []>} : vector<8x8xbf16>, vector<8x256xbf16>, vector<8x256xf32> -> vector<8x256xf32>
    %c0_5 = arith.constant 0 : index
    %c0_6 = arith.constant 0 : index
    %c0_7 = arith.constant 0 : index
    %6 = vector.load %arg4[%c0_5, %c0_6, %c0_7] : memref<1x8x1xf32, #tpu.memory_space<vmem>>, vector<1x8x1xf32>
    %7 = vector.shape_cast %6 : vector<1x8x1xf32> to vector<8x1xf32>
    %8 = vector.broadcast %7 : vector<8x1xf32> to vector<8x256xf32>
    %9 = arith.addf %5, %8 : vector<8x256xf32>
    %10 = arith.addf %9, %1 : vector<8x256xf32>
    %c0_8 = arith.constant 0 : index
    %c0_9 = arith.constant 0 : index
    %c0_10 = arith.constant 0 : index
    %11 = vector.load %arg5[%c0_8, %c0_9, %c0_10] : memref<1x8x256xf32, #tpu.memory_space<vmem>>, vector<1x8x256xf32>
    %12 = vector.shape_cast %11 : vector<1x8x256xf32> to vector<8x256xf32>
    %13 = vector.shape_cast %10 : vector<8x256xf32> to vector<1x8x256xf32>
    tpu.vector_store %arg5[%c0_8, %c0_9, %c0_10], %13 {strides = array<i32>} : memref<1x8x256xf32, #tpu.memory_space<vmem>>, vector<1x8x256xf32>,
    return
  }
  func.func @transform_0(%arg0: i32, %arg1: i32) -> (i32, i32, i32) {
    %c0_i32 = arith.constant 0 : i32
    %c0_i32_0 = arith.constant 0 : i32
    return %arg0, %c0_i32, %arg1 : i32, i32, i32
  }
  func.func @transform_1(%arg0: i32, %arg1: i32) -> (i32, i32, i32) {
    %c0_i32 = arith.constant 0 : i32
    %c0_i32_0 = arith.constant 0 : i32
    %c0_i32_1 = arith.constant 0 : i32
    return %arg0, %c0_i32, %c0_i32_0 : i32, i32, i32
  }
  func.func @transform_2(%arg0: i32, %arg1: i32) -> (i32, i32, i32) {
    %c0_i32 = arith.constant 0 : i32
    %c0_i32_0 = arith.constant 0 : i32
    %c0_i32_1 = arith.constant 0 : i32
    return %arg0, %c0_i32, %c0_i32_0 : i32, i32, i32
  }
  func.func @transform_3(%arg0: i32, %arg1: i32) -> (i32, i32, i32) {
    %c0_i32 = arith.constant 0 : i32
    %c0_i32_0 = arith.constant 0 : i32
    return %arg0, %c0_i32, %arg1 : i32, i32, i32
  }
}

</mosaic_0001>

<llo_original>
// kernel: selfam_pallas.2
$region0: #{selfam_pallas.2}
  #allocation0 [shape = 'u32[]', space=smem, size = 0x4, offset = 0x4, fixed_abs, tag = 'smem constant byte address 0x4 - core index']
  #allocation1 [shape = 'u32[144,128]{1,0:T(1,128)}', space=vmem, size = 0x12000, scoped, tag = 'internal scratch']
  %s0 = inlined_call_operand.vmem [shape: f32[2,8,256], index: 0, kind: input, shape index: {}]
  %s1 = inlined_call_operand.vmem [shape: f32[2,8,8], index: 1, kind: output, shape index: {0}]
  %s2 = inlined_call_operand.vmem [shape: f32[2,8,1], index: 2, kind: output, shape index: {1}]
  %3 = xla_tuple %s1, %s2
  %s4 = sld [smem:[#allocation0]]
  $region49: #{selfam_pallas.2} parent=0
    _
  %s6 = ssub.s32 1, %s4
  %s7 = scalar_select 0, %s6, %s4
  loop: start=0, step=1, limit=4
  $region2: #{selfam_pallas.2} parent=0 // loop_pre_header
    _
  $region3: #{selfam_pallas.2} parent=0 // loop_header
    %s9 = sphi 0, %s13
    %p10 = scmp.ge.s32.totalorder %s9, 4
    %s16 = sphi 0, %s28
    %s17 = sphi 0, %s24
    %s18 = sphi 0, %s16
    %s19 = sphi 0, %s17
    %s20 = sphi 0, %s18
    %s21 = sphi 0, %s19
    %s33 = sphi 0, %s35
    %s36 = sphi 0, %s33
    %s37 = sphi 0, %s36
    %s53 = sphi 0, %s37
    %s59 = sphi 0, %s61
    %s62 = sphi 0, %s59
    %s63 = sphi 0, %s62
    %s79 = sphi 0, %s63
    %s85 = sphi 0, %s87
    %s88 = sphi 0, %s85
    %s89 = sphi 0, %s88
    %s105 = sphi 0, %s89
  $region4: #{selfam_pallas.2} parent=0 // loop_header_branch
    %12 = sbr.rel (%p10) target = $region8
  $region5: #{selfam_pallas.2} parent=0 // loop_body
    %s14 = ssub.s32 %s9, 1
    %s15 = ssub.s32 %s9, 2
    %s22 = sadd.s32 1, %s17
    %p23 = scmp.ge.s32.totalorder %s22, 1
    %s24 = scalar_select %p23, 0, %s22
    %s25 = sadd.s32 1, %s16
    %s26 = scalar_select %p23, %s25, %s16
    %p27 = scmp.ge.s32.totalorder %s26, 2
    %s28 = scalar_select %p27, 0, %s26
    %s29 = ssub.s32 %s16, %s28
    %s30 = ssub.s32 %s17, %s24
    %s31 = sor.u32 %s29, %s30
    %p32 = scmp.eq.s32.totalorder %s31, 0
    %s34 = sadd.s32 %s33, 1
    %s35 = scalar_select %p32, %s33, %s34
    %p38 = pneg %p32
    %p39 = scmp.eq.s32.totalorder %s9, 1
    %p40 = por %p38, %p39
    %p41 = scmp.ne.s32.totalorder %s33, %s36
    %p42 = scmp.eq.s32.totalorder %s9, 0
    %p43 = por %p41, %p42
    %p44 = scmp.ne.s32.totalorder %s33, %s36
    %p45 = scmp.eq.s32.totalorder %s14, 1
    %p46 = por %p44, %p45
    %p47 = scmp.ne.s32.totalorder %s36, %s37
    %p48 = scmp.eq.s32.totalorder %s14, 0
    %p49 = por %p47, %p48
    %p50 = scmp.ne.s32.totalorder %s36, %s37
    %p51 = scmp.eq.s32.totalorder %s15, 1
    %p52 = por %p50, %p51
    %p54 = scmp.ne.s32.totalorder %s37, %s53
    %p55 = scmp.eq.s32.totalorder %s15, 0
    %p56 = por %p54, %p55
    %s57 = ssub.s32 %s16, %s28
    %p58 = scmp.eq.s32.totalorder %s57, 0
    %s60 = sadd.s32 %s59, 1
    %s61 = scalar_select %p58, %s59, %s60
    %p64 = pneg %p58
    %p65 = scmp.eq.s32.totalorder %s9, 1
    %p66 = por %p64, %p65
    %p67 = scmp.ne.s32.totalorder %s59, %s62
    %p68 = scmp.eq.s32.totalorder %s9, 0
    %p69 = por %p67, %p68
    %p70 = scmp.ne.s32.totalorder %s59, %s62
    %p71 = scmp.eq.s32.totalorder %s14, 1
    %p72 = por %p70, %p71
    %p73 = scmp.ne.s32.totalorder %s62, %s63
    %p74 = scmp.eq.s32.totalorder %s14, 0
    %p75 = por %p73, %p74
    %p76 = scmp.ne.s32.totalorder %s62, %s63
    %p77 = scmp.eq.s32.totalorder %s15, 1
    %p78 = por %p76, %p77
    %p80 = scmp.ne.s32.totalorder %s63, %s79
    %p81 = scmp.eq.s32.totalorder %s15, 0
    %p82 = por %p80, %p81
    %s83 = ssub.s32 %s16, %s28
    %p84 = scmp.eq.s32.totalorder %s83, 0
    %s86 = sadd.s32 %s85, 1
    %s87 = scalar_select %p84, %s85, %s86
    %p90 = pneg %p84
    %p91 = scmp.eq.s32.totalorder %s9, 1
    %p92 = por %p90, %p91
    %p93 = scmp.ne.s32.totalorder %s85, %s88
    %p94 = scmp.eq.s32.totalorder %s9, 0
    %p95 = por %p93, %p94
    %p96 = scmp.ne.s32.totalorder %s85, %s88
    %p97 = scmp.eq.s32.totalorder %s14, 1
    %p98 = por %p96, %p97
    %p99 = scmp.ne.s32.totalorder %s88, %s89
    %p100 = scmp.eq.s32.totalorder %s14, 0
    %p101 = por %p99, %p100
    %p102 = scmp.ne.s32.totalorder %s88, %s89
    %p103 = scmp.eq.s32.totalorder %s15, 1
    %p104 = por %p102, %p103
    %p106 = scmp.ne.s32.totalorder %s89, %s105
    %p107 = scmp.eq.s32.totalorder %s15, 0
    %p108 = por %p106, %p107
    %p109 = scmp.le.s32.totalorder 1, %s9
    %p110 = scmp.lt.s32.totalorder %s9, 3
    %p111 = pnand %p109, %p110
    %p112 = pneg %p111
    // Predicated region
    $region9: #{selfam_pallas.2} parent=5 // pred_check
      _
    $region10: #{selfam_pallas.2} parent=5 // pred_check_branch
      %114 = sbr.rel (%p111) target = $region12
    $region11: #{selfam_pallas.2} parent=5 // pred_region
      %s115 = ssub.s32 %s9, 1
    $region12: #{selfam_pallas.2} parent=5 // pred_fallthru
      _
    %p116 = scmp.lt.s32.totalorder %s9, 2
    // Predicated region
    $region13: #{selfam_pallas.2} parent=5 // pred_check
      %p117 = pneg %p116
    $region14: #{selfam_pallas.2} parent=5 // pred_check_branch
      %119 = sbr.rel (%p117) target = $region16
    $region15: #{selfam_pallas.2} parent=5 // pred_region
      // Predicated region
      $region17: #{selfam_pallas.2} parent=15 // pred_check
        %p120 = pneg %p43
      $region18: #{selfam_pallas.2} parent=15 // pred_check_branch
        %122 = sbr.rel (%p120) target = $region20
      $region19: #{selfam_pallas.2} parent=15 // pred_region
        %s123 = smul.u32 2, %s17
        %p124 = scmp.lt.s32.totalorder %s16, 1
        %s125 = scalar_select %p124, %s16, 1
        %p126 = scmp.lt.s32.totalorder %s123, 1
        %s127 = scalar_select %p126, %s123, 1
        %s128 = smul.addr %s125, 2
        %s129 = sadd.s32 %s127, %s128
        %s130 = smul.addr %s129, 8
        %s131 = scalar_lea.vmem %s0, %s130
        %s132 = smul.u32 2, %s17
      $region20: #{selfam_pallas.2} parent=15 // pred_fallthru
        _
    $region16: #{selfam_pallas.2} parent=5 // pred_fallthru
      _
    %p133 = scmp.le.s32.totalorder 1, %s9
    %p134 = scmp.lt.s32.totalorder %s9, 3
    %p135 = pnand %p133, %p134
    %p136 = pneg %p135
    // Predicated region
    $region21: #{selfam_pallas.2} parent=5 // pred_check
      _
    $region22: #{selfam_pallas.2} parent=5 // pred_check_branch
      %138 = sbr.rel (%p135) target = $region24
    $region23: #{selfam_pallas.2} parent=5 // pred_region
      %s139 = ssub.s32 %s9, 1
      %s140 = smul.u32 2, %s19
      %p141 = scmp.lt.s32.totalorder %s18, 1
      %s142 = scalar_select %p141, %s18, 1
      %p143 = scmp.lt.s32.totalorder %s140, 1
      %s144 = scalar_select %p143, %s140, 1
      %s145 = smul.addr %s142, 2
      %s146 = sadd.s32 %s144, %s145
      %s147 = smul.addr %s146, 8
      %s148 = scalar_lea.vmem %s0, %s147
      %p149 = pneg %p49
      %p150 = pneg %p46
      %p151 = pneg %p75
      %p152 = pneg %p72
      %p153 = scmp.lt.s32.totalorder %s18, 1
      %s154 = scalar_select %p153, %s18, 1
      %s155 = smul.addr %s154, 8
      %s156 = scalar_lea.vmem %s1, %s155
      %p157 = pneg %p101
      %p158 = pneg %p98
      %p159 = scmp.lt.s32.totalorder %s18, 1
      %s160 = scalar_select %p159, %s18, 1
      %s161 = smul.addr %s160, 8
      %s162 = scalar_lea.vmem %s2, %s161
      %s163 = smul.u32 2, %s19
      %p164 = scmp.lt.s32.totalorder %s18, 1
      %s165 = scalar_select %p164, %s18, 1
      %p166 = scmp.lt.s32.totalorder %s163, 1
      %s167 = scalar_select %p166, %s163, 1
      %s168 = smul.addr %s165, 2
      %s169 = sadd.s32 %s167, %s168
      %s170 = smul.addr %s169, 8
      %s171 = scalar_lea.vmem %s0, %s170
      %s172 = smul.u32 2, %s19
      %p173 = scmp.lt.s32.totalorder %s18, 1
      %s174 = scalar_select %p173, %s18, 1
      %s175 = smul.addr %s174, 8
      %s176 = scalar_lea.vmem %s1, %s175
      %p177 = scmp.lt.s32.totalorder %s18, 1
      %s178 = scalar_select %p177, %s18, 1
      %s179 = smul.addr %s178, 8
      %s180 = scalar_lea.vmem %s2, %s179
      %p182 = scmp.eq.s32.totalorder %s19, 0
      // Predicated region
      $region25: #{selfam_pallas.2} parent=23 // pred_check
        %p183 = pneg %p182
      $region26: #{selfam_pallas.2} parent=23 // pred_check_branch
        %185 = sbr.rel (%p183) target = $region28
      $region27: #{selfam_pallas.2} parent=23 // pred_region
        %vm186 = vcmask 64512
        %187 = vst.msk [vmem:[%s176] sm:$0xff] %vm186, 0.0
        %vm188 = vcmask 7168
        %189 = vst.msk [vmem:[%s180] sm:$0xff] %vm188, 0.0
      $region28: #{selfam_pallas.2} parent=23 // pred_fallthru
        _
      %v190 = vld [vmem:[%s171] sm:$0xff]
      %v191 = vld [vmem:[%s171 + $0x8] sm:$0xff]
      %v192 = vpack.c.bf16 %v190, %v190
      %v193 = vpack.c.bf16 %v191, %v191
      %v194 = vld [vmem:[%s176] sm:$0xff]
      %195 = vmatprep.subr.bf16.mxu0 %v193
      %196 = vmatpush1.bf16.xpose.msra.mxu0 %v192
      %197 = vmatprep.subr.bf16.mxu0 0
      %198 = vmatpush1.bf16.xpose.msra.mxu0 0
      %199 = vmatprep.subr.bf16.mxu0 0
      %200 = vmatpush1.bf16.xpose.msra.mxu0 0
      %201 = vmatprep.subr.bf16.mxu0 0
      %202 = vmatpush1.bf16.xpose.msra.mxu0 0
      %203 = vmatprep.subr.bf16.mxu0 0
      %204 = vmatpush1.bf16.xpose.msra.mxu0 0
      %205 = vmatprep.subr.bf16.mxu0 0
      %206 = vmatpush1.bf16.xpose.msra.mxu0 0
      %207 = vmatprep.subr.bf16.mxu0 0
      %208 = vmatpush1.bf16.xpose.msra.mxu0 0
      %209 = vmatprep.subr.bf16.mxu0 0
      %210 = vmatpush1.bf16.xpose.msra.mxu0 0
      %211 = vmatprep.subr.bf16.mxu0 0
      %212 = vmatpush1.bf16.xpose.msra.mxu0 0
      %213 = vmatprep.subr.bf16.mxu0 0
      %214 = vmatpush1.bf16.xpose.msra.mxu0 0
      %215 = vmatprep.subr.bf16.mxu0 0
      %216 = vmatpush1.bf16.xpose.msra.mxu0 0
      %217 = vmatprep.subr.bf16.mxu0 0
      %218 = vmatpush1.bf16.xpose.msra.mxu0 0
      %219 = vmatprep.subr.bf16.mxu0 0
      %220 = vmatpush1.bf16.xpose.msra.mxu0 0
      %221 = vmatprep.subr.bf16.mxu0 0
      %222 = vmatpush1.bf16.xpose.msra.mxu0 0
      %223 = vmatprep.subr.bf16.mxu0 0
      %224 = vmatpush1.bf16.xpose.msra.mxu0 0
      %225 = vmatprep.subr.bf16.mxu0 0
      %226 = vmatpush1.bf16.xpose.msra.mxu0 0
      %227 = vmatprep.mubr.bf16.mxu0 %v193
      %228 = vmatmul.mubr.bf16.gmra.mrb[0].mxu0 %v192
      %v229 = vpop.f32.mrb[0].mxu0
      %v230 = vadd.f32 0.0, %v229
      %v231 = vpop.f32.mrb[0].mxu0
      %v232 = vpop.f32.mrb[0].mxu0
      %v233 = vpop.f32.mrb[0].mxu0
      %234 = vdwg.mxu0
      %v235 = vadd.f32 %v194, %v230
      %vm236 = vcmask 64512
      %237 = vst.msk [vmem:[%s176] sm:$0xff] %vm236, %v235
      %v238 = vld [vmem:[%s180] sm:$0xff]
      %v239 = vadd.f32 %v190, %v191
      %240 = vadd.xlane.f32.xlu0 %v239
      %v241 = vpop.xlane.xlu0 %240
      %v242 = vadd.f32 %v238, %v241
      %vm243 = vcmask 7168
      %244 = vst.msk [vmem:[%s180] sm:$0xff] %vm243, %v242
      %p245 = scmp.lt.s32.totalorder %s18, 1
      %s246 = scalar_select %p245, %s18, 1
      %s247 = smul.addr %s246, 8
      %s248 = scalar_lea.vmem %s1, %s247
      %p249 = scmp.lt.s32.totalorder %s18, 1
      %s250 = scalar_select %p249, %s18, 1
      %s251 = smul.addr %s250, 8
      %s252 = scalar_lea.vmem %s2, %s251
      // Predicated region
      $region29: #{selfam_pallas.2} parent=23 // pred_check
        %p253 = pneg %p72
      $region30: #{selfam_pallas.2} parent=23 // pred_check_branch
        %255 = sbr.rel (%p253) target = $region32
      $region31: #{selfam_pallas.2} parent=23 // pred_region
        _
      $region32: #{selfam_pallas.2} parent=23 // pred_fallthru
        _
      // Predicated region
      $region33: #{selfam_pallas.2} parent=23 // pred_check
        %p256 = pneg %p98
      $region34: #{selfam_pallas.2} parent=23 // pred_check_branch
        %258 = sbr.rel (%p256) target = $region36
      $region35: #{selfam_pallas.2} parent=23 // pred_region
        _
      $region36: #{selfam_pallas.2} parent=23 // pred_fallthru
        _
    $region24: #{selfam_pallas.2} parent=5 // pred_fallthru
      _
    %p259 = scmp.le.s32.totalorder 2, %s9
    // Predicated region
    $region37: #{selfam_pallas.2} parent=5 // pred_check
      %p260 = pneg %p259
    $region38: #{selfam_pallas.2} parent=5 // pred_check_branch
      %262 = sbr.rel (%p260) target = $region40
    $region39: #{selfam_pallas.2} parent=5 // pred_region
      %s263 = ssub.s32 %s9, 2
      // Predicated region
      $region41: #{selfam_pallas.2} parent=39 // pred_check
        %p264 = pneg %p78
      $region42: #{selfam_pallas.2} parent=39 // pred_check_branch
        %266 = sbr.rel (%p264) target = $region44
      $region43: #{selfam_pallas.2} parent=39 // pred_region
        %p267 = scmp.lt.s32.totalorder %s20, 1
        %s268 = scalar_select %p267, %s20, 1
        %s269 = smul.addr %s268, 8
        %s270 = scalar_lea.vmem %s1, %s269
      $region44: #{selfam_pallas.2} parent=39 // pred_fallthru
        _
      // Predicated region
      $region45: #{selfam_pallas.2} parent=39 // pred_check
        %p271 = pneg %p104
      $region46: #{selfam_pallas.2} parent=39 // pred_check_branch
        %273 = sbr.rel (%p271) target = $region48
      $region47: #{selfam_pallas.2} parent=39 // pred_region
        %p274 = scmp.lt.s32.totalorder %s20, 1
        %s275 = scalar_select %p274, %s20, 1
        %s276 = smul.addr %s275, 8
        %s277 = scalar_lea.vmem %s2, %s276
      $region48: #{selfam_pallas.2} parent=39 // pred_fallthru
        _
    $region40: #{selfam_pallas.2} parent=5 // pred_fallthru
      _
  $region6: #{selfam_pallas.2} parent=0 // loop_footer
    %s13 = sadd.s32 1, %s9
  $region7: #{selfam_pallas.2} parent=0 // loop_footer_branch
    %8 = sbr.rel target = $region3
  $region8: #{selfam_pallas.2} parent=0 // loop_exit
    _

// kernel: selfam_pallas.3
$region0: #{selfam_pallas.3}
  #allocation0 [shape = 'u32[]', space=smem, size = 0x4, offset = 0x4, fixed_abs, tag = 'smem constant byte address 0x4 - core index']
  #allocation1 [shape = 'u32[144,128]{1,0:T(1,128)}', space=vmem, size = 0x12000, scoped, tag = 'internal scratch']
  %s0 = inlined_call_operand.vmem [shape: f32[2,8,256], index: 0, kind: input, shape index: {}]
  %s1 = inlined_call_operand.vmem [shape: bf16[2,8,8], index: 1, kind: input, shape index: {}]
  %s2 = inlined_call_operand.vmem [shape: f32[2,8,1], index: 2, kind: input, shape index: {}]
  %s3 = inlined_call_operand.vmem [shape: f32[2,8,256], index: 3, kind: output, shape index: {}]
  %s4 = sld [smem:[#allocation0]]
  $region45: #{selfam_pallas.3} parent=0
    _
  %s6 = ssub.s32 1, %s4
  %s7 = scalar_select 0, %s6, %s4
  loop: start=0, step=1, limit=4
  $region2: #{selfam_pallas.3} parent=0 // loop_pre_header
    _
  $region3: #{selfam_pallas.3} parent=0 // loop_header
    %s9 = sphi 0, %s13
    %p10 = scmp.ge.s32.totalorder %s9, 4
    %s16 = sphi 0, %s28
    %s17 = sphi 0, %s24
    %s18 = sphi 0, %s16
    %s19 = sphi 0, %s17
    %s20 = sphi 0, %s18
    %s21 = sphi 0, %s19
    %s33 = sphi 0, %s35
    %s36 = sphi 0, %s33
    %s37 = sphi 0, %s36
    %s53 = sphi 0, %s37
    %s59 = sphi 0, %s61
    %s62 = sphi 0, %s59
    %s63 = sphi 0, %s62
    %s79 = sphi 0, %s63
    %s85 = sphi 0, %s87
    %s88 = sphi 0, %s85
    %s89 = sphi 0, %s88
    %s105 = sphi 0, %s89
    %s113 = sphi 0, %s115
    %s116 = sphi 0, %s113
    %s117 = sphi 0, %s116
    %s133 = sphi 0, %s117
  $region4: #{selfam_pallas.3} parent=0 // loop_header_branch
    %12 = sbr.rel (%p10) target = $region8
  $region5: #{selfam_pallas.3} parent=0 // loop_body
    %s14 = ssub.s32 %s9, 1
    %s15 = ssub.s32 %s9, 2
    %s22 = sadd.s32 1, %s17
    %p23 = scmp.ge.s32.totalorder %s22, 1
    %s24 = scalar_select %p23, 0, %s22
    %s25 = sadd.s32 1, %s16
    %s26 = scalar_select %p23, %s25, %s16
    %p27 = scmp.ge.s32.totalorder %s26, 2
    %s28 = scalar_select %p27, 0, %s26
    %s29 = ssub.s32 %s16, %s28
    %s30 = ssub.s32 %s17, %s24
    %s31 = sor.u32 %s29, %s30
    %p32 = scmp.eq.s32.totalorder %s31, 0
    %s34 = sadd.s32 %s33, 1
    %s35 = scalar_select %p32, %s33, %s34
    %p38 = pneg %p32
    %p39 = scmp.eq.s32.totalorder %s9, 1
    %p40 = por %p38, %p39
    %p41 = scmp.ne.s32.totalorder %s33, %s36
    %p42 = scmp.eq.s32.totalorder %s9, 0
    %p43 = por %p41, %p42
    %p44 = scmp.ne.s32.totalorder %s33, %s36
    %p45 = scmp.eq.s32.totalorder %s14, 1
    %p46 = por %p44, %p45
    %p47 = scmp.ne.s32.totalorder %s36, %s37
    %p48 = scmp.eq.s32.totalorder %s14, 0
    %p49 = por %p47, %p48
    %p50 = scmp.ne.s32.totalorder %s36, %s37
    %p51 = scmp.eq.s32.totalorder %s15, 1
    %p52 = por %p50, %p51
    %p54 = scmp.ne.s32.totalorder %s37, %s53
    %p55 = scmp.eq.s32.totalorder %s15, 0
    %p56 = por %p54, %p55
    %s57 = ssub.s32 %s16, %s28
    %p58 = scmp.eq.s32.totalorder %s57, 0
    %s60 = sadd.s32 %s59, 1
    %s61 = scalar_select %p58, %s59, %s60
    %p64 = pneg %p58
    %p65 = scmp.eq.s32.totalorder %s9, 1
    %p66 = por %p64, %p65
    %p67 = scmp.ne.s32.totalorder %s59, %s62
    %p68 = scmp.eq.s32.totalorder %s9, 0
    %p69 = por %p67, %p68
    %p70 = scmp.ne.s32.totalorder %s59, %s62
    %p71 = scmp.eq.s32.totalorder %s14, 1
    %p72 = por %p70, %p71
    %p73 = scmp.ne.s32.totalorder %s62, %s63
    %p74 = scmp.eq.s32.totalorder %s14, 0
    %p75 = por %p73, %p74
    %p76 = scmp.ne.s32.totalorder %s62, %s63
    %p77 = scmp.eq.s32.totalorder %s15, 1
    %p78 = por %p76, %p77
    %p80 = scmp.ne.s32.totalorder %s63, %s79
    %p81 = scmp.eq.s32.totalorder %s15, 0
    %p82 = por %p80, %p81
    %s83 = ssub.s32 %s16, %s28
    %p84 = scmp.eq.s32.totalorder %s83, 0
    %s86 = sadd.s32 %s85, 1
    %s87 = scalar_select %p84, %s85, %s86
    %p90 = pneg %p84
    %p91 = scmp.eq.s32.totalorder %s9, 1
    %p92 = por %p90, %p91
    %p93 = scmp.ne.s32.totalorder %s85, %s88
    %p94 = scmp.eq.s32.totalorder %s9, 0
    %p95 = por %p93, %p94
    %p96 = scmp.ne.s32.totalorder %s85, %s88
    %p97 = scmp.eq.s32.totalorder %s14, 1
    %p98 = por %p96, %p97
    %p99 = scmp.ne.s32.totalorder %s88, %s89
    %p100 = scmp.eq.s32.totalorder %s14, 0
    %p101 = por %p99, %p100
    %p102 = scmp.ne.s32.totalorder %s88, %s89
    %p103 = scmp.eq.s32.totalorder %s15, 1
    %p104 = por %p102, %p103
    %p106 = scmp.ne.s32.totalorder %s89, %s105
    %p107 = scmp.eq.s32.totalorder %s15, 0
    %p108 = por %p106, %p107
    %s109 = ssub.s32 %s16, %s28
    %s110 = ssub.s32 %s17, %s24
    %s111 = sor.u32 %s109, %s110
    %p112 = scmp.eq.s32.totalorder %s111, 0
    %s114 = sadd.s32 %s113, 1
    %s115 = scalar_select %p112, %s113, %s114
    %p118 = pneg %p112
    %p119 = scmp.eq.s32.totalorder %s9, 1
    %p120 = por %p118, %p119
    %p121 = scmp.ne.s32.totalorder %s113, %s116
    %p122 = scmp.eq.s32.totalorder %s9, 0
    %p123 = por %p121, %p122
    %p124 = scmp.ne.s32.totalorder %s113, %s116
    %p125 = scmp.eq.s32.totalorder %s14, 1
    %p126 = por %p124, %p125
    %p127 = scmp.ne.s32.totalorder %s116, %s117
    %p128 = scmp.eq.s32.totalorder %s14, 0
    %p129 = por %p127, %p128
    %p130 = scmp.ne.s32.totalorder %s116, %s117
    %p131 = scmp.eq.s32.totalorder %s15, 1
    %p132 = por %p130, %p131
    %p134 = scmp.ne.s32.totalorder %s117, %s133
    %p135 = scmp.eq.s32.totalorder %s15, 0
    %p136 = por %p134, %p135
    %p137 = scmp.le.s32.totalorder 1, %s9
    %p138 = scmp.lt.s32.totalorder %s9, 3
    %p139 = pnand %p137, %p138
    %p140 = pneg %p139
    // Predicated region
    $region9: #{selfam_pallas.3} parent=5 // pred_check
      _
    $region10: #{selfam_pallas.3} parent=5 // pred_check_branch
      %142 = sbr.rel (%p139) target = $region12
    $region11: #{selfam_pallas.3} parent=5 // pred_region
      %s143 = ssub.s32 %s9, 1
    $region12: #{selfam_pallas.3} parent=5 // pred_fallthru
      _
    %p144 = scmp.lt.s32.totalorder %s9, 2
    // Predicated region
    $region13: #{selfam_pallas.3} parent=5 // pred_check
      %p145 = pneg %p144
    $region14: #{selfam_pallas.3} parent=5 // pred_check_branch
      %147 = sbr.rel (%p145) target = $region16
    $region15: #{selfam_pallas.3} parent=5 // pred_region
      // Predicated region
      $region17: #{selfam_pallas.3} parent=15 // pred_check
        %p148 = pneg %p43
      $region18: #{selfam_pallas.3} parent=15 // pred_check_branch
        %150 = sbr.rel (%p148) target = $region20
      $region19: #{selfam_pallas.3} parent=15 // pred_region
        %s151 = smul.u32 2, %s17
        %p152 = scmp.lt.s32.totalorder %s16, 1
        %s153 = scalar_select %p152, %s16, 1
        %p154 = scmp.lt.s32.totalorder %s151, 1
        %s155 = scalar_select %p154, %s151, 1
        %s156 = smul.addr %s153, 2
        %s157 = sadd.s32 %s155, %s156
        %s158 = smul.addr %s157, 8
        %s159 = scalar_lea.vmem %s0, %s158
        %s160 = smul.u32 2, %s17
      $region20: #{selfam_pallas.3} parent=15 // pred_fallthru
        _
      // Predicated region
      $region21: #{selfam_pallas.3} parent=15 // pred_check
        %p161 = pneg %p69
      $region22: #{selfam_pallas.3} parent=15 // pred_check_branch
        %163 = sbr.rel (%p161) target = $region24
      $region23: #{selfam_pallas.3} parent=15 // pred_region
        %p164 = scmp.lt.s32.totalorder %s16, 1
        %s165 = scalar_select %p164, %s16, 1
        %s166 = smul.addr %s165, 4
        %s167 = scalar_lea.vmem %s1, %s166
      $region24: #{selfam_pallas.3} parent=15 // pred_fallthru
        _
      // Predicated region
      $region25: #{selfam_pallas.3} parent=15 // pred_check
        %p168 = pneg %p95
      $region26: #{selfam_pallas.3} parent=15 // pred_check_branch
        %170 = sbr.rel (%p168) target = $region28
      $region27: #{selfam_pallas.3} parent=15 // pred_region
        %p171 = scmp.lt.s32.totalorder %s16, 1
        %s172 = scalar_select %p171, %s16, 1
        %s173 = smul.addr %s172, 8
        %s174 = scalar_lea.vmem %s2, %s173
      $region28: #{selfam_pallas.3} parent=15 // pred_fallthru
        _
    $region16: #{selfam_pallas.3} parent=5 // pred_fallthru
      _
    %p175 = scmp.le.s32.totalorder 1, %s9
    %p176 = scmp.lt.s32.totalorder %s9, 3
    %p177 = pnand %p175, %p176
    %p178 = pneg %p177
    // Predicated region
    $region29: #{selfam_pallas.3} parent=5 // pred_check
      _
    $region30: #{selfam_pallas.3} parent=5 // pred_check_branch
      %180 = sbr.rel (%p177) target = $region32
    $region31: #{selfam_pallas.3} parent=5 // pred_region
      %s181 = ssub.s32 %s9, 1
      %s182 = smul.u32 2, %s19
      %p183 = scmp.lt.s32.totalorder %s18, 1
      %s184 = scalar_select %p183, %s18, 1
      %p185 = scmp.lt.s32.totalorder %s182, 1
      %s186 = scalar_select %p185, %s182, 1
      %s187 = smul.addr %s184, 2
      %s188 = sadd.s32 %s186, %s187
      %s189 = smul.addr %s188, 8
      %s190 = scalar_lea.vmem %s0, %s189
      %p191 = pneg %p49
      %p192 = pneg %p46
      %p193 = scmp.lt.s32.totalorder %s18, 1
      %s194 = scalar_select %p193, %s18, 1
      %s195 = smul.addr %s194, 4
      %s196 = scalar_lea.vmem %s1, %s195
      %p197 = pneg %p75
      %p198 = pneg %p72
      %p199 = scmp.lt.s32.totalorder %s18, 1
      %s200 = scalar_select %p199, %s18, 1
      %s201 = smul.addr %s200, 8
      %s202 = scalar_lea.vmem %s2, %s201
      %p203 = pneg %p101
      %p204 = pneg %p98
      %p205 = pneg %p129
      %p206 = pneg %p126
      %s207 = smul.u32 2, %s19
      %p208 = scmp.lt.s32.totalorder %s18, 1
      %s209 = scalar_select %p208, %s18, 1
      %p210 = scmp.lt.s32.totalorder %s207, 1
      %s211 = scalar_select %p210, %s207, 1
      %s212 = smul.addr %s209, 2
      %s213 = sadd.s32 %s211, %s212
      %s214 = smul.addr %s213, 8
      %s215 = scalar_lea.vmem %s3, %s214
      %s216 = smul.u32 2, %s19
      %p217 = scmp.lt.s32.totalorder %s18, 1
      %s218 = scalar_select %p217, %s18, 1
      %p219 = scmp.lt.s32.totalorder %s216, 1
      %s220 = scalar_select %p219, %s216, 1
      %s221 = smul.addr %s218, 2
      %s222 = sadd.s32 %s220, %s221
      %s223 = smul.addr %s222, 8
      %s224 = scalar_lea.vmem %s0, %s223
      %s225 = smul.u32 2, %s19
      %p226 = scmp.lt.s32.totalorder %s18, 1
      %s227 = scalar_select %p226, %s18, 1
      %s228 = smul.addr %s227, 4
      %s229 = scalar_lea.vmem %s1, %s228
      %p230 = scmp.lt.s32.totalorder %s18, 1
      %s231 = scalar_select %p230, %s18, 1
      %s232 = smul.addr %s231, 8
      %s233 = scalar_lea.vmem %s2, %s232
      %s234 = smul.u32 2, %s19
      %p235 = scmp.lt.s32.totalorder %s18, 1
      %s236 = scalar_select %p235, %s18, 1
      %p237 = scmp.lt.s32.totalorder %s234, 1
      %s238 = scalar_select %p237, %s234, 1
      %s239 = smul.addr %s236, 2
      %s240 = sadd.s32 %s238, %s239
      %s241 = smul.addr %s240, 8
      %s242 = scalar_lea.vmem %s3, %s241
      %s243 = smul.u32 2, %s19
      %v245 = vld [vmem:[%s224] sm:$0xff]
      %v246 = vld [vmem:[%s224 + $0x8] sm:$0xff]
      %v247 = vld [vmem:[%s229] sm:$0xf]
      %v248 = vpack.c.bf16 %v245, %v245
      %v249 = vpack.c.bf16 %v246, %v246
      %v250 = vld [vmem:[%s233] sm:$0xff]
      %252 = vset.pattern.permute.xlu0 0
      %253 = vperm.xlu0 %252, %v250
      %v254 = vpop.permute.xlu0 %253
      %vm256 = vcmask 64512
      %v258 = vsel %vm256, %v247, 0
      %vm260 = vcmask 1043456
      %v262 = vsel %vm260, %v248, 0
      %v265 = vsel %vm260, %v249, 0
      %267 = vmatprep.subr.bf16.mxu0 %v265
      %268 = vmatpush1.bf16.msra.mxu0 %v262
      %269 = vmatprep.subr.bf16.mxu0 0
      %270 = vmatpush1.bf16.msra.mxu0 0
      %271 = vmatprep.subr.bf16.mxu0 0
      %272 = vmatpush1.bf16.msra.mxu0 0
      %273 = vmatprep.subr.bf16.mxu0 0
      %274 = vmatpush1.bf16.msra.mxu0 0
      %275 = vmatprep.subr.bf16.mxu0 0
      %276 = vmatpush1.bf16.msra.mxu0 0
      %277 = vmatprep.subr.bf16.mxu0 0
      %278 = vmatpush1.bf16.msra.mxu0 0
      %279 = vmatprep.subr.bf16.mxu0 0
      %280 = vmatpush1.bf16.msra.mxu0 0
      %281 = vmatprep.subr.bf16.mxu0 0
      %282 = vmatpush1.bf16.msra.mxu0 0
      %283 = vmatprep.subr.bf16.mxu0 0
      %284 = vmatpush1.bf16.msra.mxu0 0
      %285 = vmatprep.subr.bf16.mxu0 0
      %286 = vmatpush1.bf16.msra.mxu0 0
      %287 = vmatprep.subr.bf16.mxu0 0
      %288 = vmatpush1.bf16.msra.mxu0 0
      %289 = vmatprep.subr.bf16.mxu0 0
      %290 = vmatpush1.bf16.msra.mxu0 0
      %291 = vmatprep.subr.bf16.mxu0 0
      %292 = vmatpush1.bf16.msra.mxu0 0
      %293 = vmatprep.subr.bf16.mxu0 0
      %294 = vmatpush1.bf16.msra.mxu0 0
      %295 = vmatprep.subr.bf16.mxu0 0
      %296 = vmatpush1.bf16.msra.mxu0 0
      %297 = vmatprep.subr.bf16.mxu0 0
      %298 = vmatpush1.bf16.msra.mxu0 0
      %299 = vmatprep.mubr.bf16.mxu0 0
      %300 = vmatmul.mubr.bf16.gmra.mrb[0].mxu0 %v258
      %v301 = vpop.f32.mrb[0].mxu0
      %v302 = vadd.f32 %v254, %v301
      %v303 = vpop.f32.mrb[0].mxu0
      %v304 = vadd.f32 %v254, %v303
      %v305 = vpop.f32.mrb[0].mxu0
      %v306 = vpop.f32.mrb[0].mxu0
      %307 = vdwg.mxu0
      %v308 = vadd.f32 %v302, %v245
      %v309 = vadd.f32 %v304, %v246
      %310 = vst [vmem:[%s242] sm:$0xff] %v308
      %311 = vst [vmem:[%s242 + $0x8] sm:$0xff] %v309
      %s312 = smul.u32 2, %s19
      %p313 = scmp.lt.s32.totalorder %s18, 1
      %s314 = scalar_select %p313, %s18, 1
      %p315 = scmp.lt.s32.totalorder %s312, 1
      %s316 = scalar_select %p315, %s312, 1
      %s317 = smul.addr %s314, 2
      %s318 = sadd.s32 %s316, %s317
      %s319 = smul.addr %s318, 8
      %s320 = scalar_lea.vmem %s3, %s319
      // Predicated region
      $region33: #{selfam_pallas.3} parent=31 // pred_check
        %p321 = pneg %p126
      $region34: #{selfam_pallas.3} parent=31 // pred_check_branch
        %323 = sbr.rel (%p321) target = $region36
      $region35: #{selfam_pallas.3} parent=31 // pred_region
        %s324 = smul.u32 2, %s19
      $region36: #{selfam_pallas.3} parent=31 // pred_fallthru
        _
    $region32: #{selfam_pallas.3} parent=5 // pred_fallthru
      _
    %p325 = scmp.le.s32.totalorder 2, %s9
    // Predicated region
    $region37: #{selfam_pallas.3} parent=5 // pred_check
      %p326 = pneg %p325
    $region38: #{selfam_pallas.3} parent=5 // pred_check_branch
      %328 = sbr.rel (%p326) target = $region40
    $region39: #{selfam_pallas.3} parent=5 // pred_region
      %s329 = ssub.s32 %s9, 2
      // Predicated region
      $region41: #{selfam_pallas.3} parent=39 // pred_check
        %p330 = pneg %p132
      $region42: #{selfam_pallas.3} parent=39 // pred_check_branch
        %332 = sbr.rel (%p330) target = $region44
      $region43: #{selfam_pallas.3} parent=39 // pred_region
        %s333 = smul.u32 2, %s21
        %p334 = scmp.lt.s32.totalorder %s20, 1
        %s335 = scalar_select %p334, %s20, 1
        %p336 = scmp.lt.s32.totalorder %s333, 1
        %s337 = scalar_select %p336, %s333, 1
        %s338 = smul.addr %s335, 2
        %s339 = sadd.s32 %s337, %s338
        %s340 = smul.addr %s339, 8
        %s341 = scalar_lea.vmem %s3, %s340
      $region44: #{selfam_pallas.3} parent=39 // pred_fallthru
        _
    $region40: #{selfam_pallas.3} parent=5 // pred_fallthru
      _
  $region6: #{selfam_pallas.3} parent=0 // loop_footer
    %s13 = sadd.s32 1, %s9
  $region7: #{selfam_pallas.3} parent=0 // loop_footer_branch
    %8 = sbr.rel target = $region3
  $region8: #{selfam_pallas.3} parent=0 // loop_exit
    _

</llo_original>
